<compile_context>
chip_gen: v6e
topology: v6e:2x2x1
jax: 0.10.0
libtpu: 0.0.40
codegen_flags: <defaults>
</compile_context>

<pallas_src>
import functools

import jax
import jax.numpy as jnp
from jax.experimental import pallas as pl
from jax.experimental.pallas import tpu as pltpu


def _crmsnorm_kernel(x_ref, gain_ref, o_ref, *, epsilon, inv_d):
    # x_ref:    (tB, tS, Dp)  tile of input rows
    # gain_ref: (tB, 1,  Dp)  precomputed  scale + cond @ W^T + b  per batch row
    # o_ref:    (tB, tS, Dp)
    xsq = jnp.square(x_ref[...].astype(jnp.float32))
    # sum * (1/D_true) instead of mean: correct even when D was lane-padded,
    # because padded lanes are zero.
    ms = jnp.sum(xsq, axis=-1, keepdims=True) * inv_d          # (tB, tS, 1), XLU reduce
    inv = jax.lax.rsqrt(ms + epsilon)                          # EUP rsqrt, ~free slot
    # Re-read x_ref so the f32 upcast of the whole tile is not live across the
    # reduction (keeps VMEM pressure down, matters most on v7x's 64 MiB).
    o_ref[...] = (x_ref[...].astype(jnp.float32) * inv
                  * gain_ref[...]).astype(o_ref.dtype)


def _vmem_budget():
    """(target tile bytes, scoped vmem limit) gated by TPU generation."""
    cap = None
    try:
        cap = getattr(pltpu.get_tpu_info(), "vmem_capacity_bytes", None)
    except Exception:
        cap = None
    if cap is not None and cap >= 100 * 1024 * 1024:
        # v5e / v6e: 128 MiB physical VMEM -> bigger tiles, raise scoped limit.
        return 8 * 1024 * 1024, 64 * 1024 * 1024
    # v7x (64 MiB per TC) or unknown: conservative settings that fit everywhere.
    return 4 * 1024 * 1024, 32 * 1024 * 1024


def _choose_tiles(B, S, D, dtype, target_bytes):
    """Pick (tB, tS) so one (tB, tS, D) block is ~target_bytes and sublane-clean."""
    itemsize = jnp.dtype(dtype).itemsize
    # dtype-aware sublane packing: f32 -> 8 rows, bf16 -> 16, int8/fp8 -> 32.
    sub = {4: 8, 2: 16, 1: 32}.get(itemsize, 8)
    row_bytes = max(D * itemsize, 1)
    slab_bytes = S * row_bytes                       # one full batch row

    if slab_bytes >= target_bytes:
        # One batch row per step; tile the sequence dim.
        tB = 1
        rows = max(target_bytes // row_bytes, sub)
        rows = (rows // sub) * sub                   # multiple of sublane pack
        tS = S if rows >= S else rows                # else: full-dim escape hatch
    else:
        # Whole sequence fits well under the target; pack batch rows per step.
        tS = S
        tB = min(B, max(1, target_bytes // max(slab_bytes, 1)))

    # v7x has 2 TensorCores: make sure the (parallel, parallel) grid has >= 2
    # blocks when feasible so the work actually splits across cores.
    if pl.cdiv(B, tB) * pl.cdiv(S, tS) < 2:
        if tB > 1:
            tB = (tB + 1) // 2
        elif B == 1 and tS == S and S > sub:
            half = ((S + 1) // 2 + sub - 1) // sub * sub
            if half < S:
                tS = half                            # partial last block is fine
    return tB, tS


def crms_norm(x, cond, weight, bias, scale, epsilon=1e-8):
    """x: (B, S, D); cond: (B, C); weight: (D, C) (PyTorch layout); bias, scale: (D,)."""
    B, S, D = x.shape
    itemsize = jnp.dtype(x.dtype).itemsize

    # Conditioning projection + affine gain as a single batched XLA GEMM (f32).
    gain = (scale.astype(jnp.float32)[None, :]
            + jnp.dot(cond.astype(jnp.float32), weight.astype(jnp.float32).T,
                      preferred_element_type=jnp.float32)
            + bias.astype(jnp.float32)[None, :])              # (B, D)

    # Lane-dense padding: keep the last dim a multiple of 128 through the kernel
    # (unmasked vst); mean is computed as sum * (1/D_true) so zeros are harmless.
    Dp = max(128, ((D + 127) // 128) * 128)
    x_p = x if Dp == D else jnp.pad(x, ((0, 0), (0, 0), (0, Dp - D)))
    gain_p = gain if Dp == D else jnp.pad(gain, ((0, 0), (0, Dp - D)))
    gain_p = gain_p.reshape(B, 1, Dp)                # (B, 1, Dp): last two dims clean

    target_bytes, vmem_limit = _vmem_budget()
    tB, tS = _choose_tiles(B, S, Dp, x.dtype, target_bytes)
    grid = (pl.cdiv(B, tB), pl.cdiv(S, tS))          # B outer, S inner (load-bearing)

    kernel = functools.partial(_crmsnorm_kernel,
                               epsilon=float(epsilon), inv_d=1.0 / float(D))

    cost = pl.CostEstimate(
        flops=int(3 * B * S * D),
        transcendentals=int(B * S),
        bytes_accessed=int(2 * B * S * Dp * itemsize + B * Dp * 4),
    )

    out = pl.pallas_call(
        kernel,
        out_shape=jax.ShapeDtypeStruct((B, S, Dp), x.dtype),
        grid_spec=pltpu.PrefetchScalarGridSpec(
            num_scalar_prefetch=0,
            grid=grid,
            in_specs=[
                # x tile: (tB, tS, Dp), lane-dense; partial last blocks are OK
                # (per-row reduction; OOB writes dropped).
                pl.BlockSpec((tB, tS, Dp), lambda b, s: (b, s, 0)),
                # Gain block: resident across all S tiles of a batch block.
                # index (b, 0, 0) is load-bearing -- do not flip the grid order.
                pl.BlockSpec((tB, 1, Dp), lambda b, s: (b, 0, 0)),
            ],
            out_specs=pl.BlockSpec((tB, tS, Dp), lambda b, s: (b, s, 0)),
        ),
        compiler_params=pltpu.CompilerParams(
            dimension_semantics=("parallel", "parallel"),
            vmem_limit_bytes=vmem_limit,
        ),
        cost_estimate=cost,
    )(x_p, gain_p)

    return out if Dp == D else out[..., :D]


def crms_norm_ref(x, cond, weight, bias, scale, epsilon=1e-8):
    norm = jnp.sqrt(jnp.mean(x ** 2, axis=-1, keepdims=True) + epsilon)
    cond_scale = (cond @ weight.T + bias)[:, None, :]
    return x / norm * (scale + cond_scale)


if __name__ == "__main__":
    # Small but layout-friendly shapes: D lane-dense (128), S a multiple of 8.
    B, S, D, C = 2, 16, 128, 16        # batch, seq, input_dim, cond_dim
    key = jax.random.PRNGKey(0)
    kx, kc, kw, kb = jax.random.split(key, 4)

    x = jax.random.normal(kx, (B, S, D), dtype=jnp.float32)
    cond = jax.random.normal(kc, (B, C), dtype=jnp.float32)

    # Deterministic "nn.Linear(cond_dim, input_dim)" params (PyTorch weight layout (D, C)).
    bound = 1.0 / jnp.sqrt(C)
    weight = jax.random.uniform(kw, (D, C), minval=-bound, maxval=bound, dtype=jnp.float32)
    bias = jax.random.uniform(kb, (D,), minval=-bound, maxval=bound, dtype=jnp.float32)
    scale = jnp.ones((D,), dtype=jnp.float32)   # self.scale = torch.ones(input_dim)

    out = jax.block_until_ready(crms_norm(x, cond, weight, bias, scale, epsilon=1e-8))

    ref = crms_norm_ref(x, cond, weight, bias, scale, epsilon=1e-8)
    assert out.shape == (B, S, D)
    assert jnp.allclose(out, ref, atol=1e-5, rtol=1e-5), "mismatch vs reference"

    print("KERNEL_OK")
</pallas_src>

<mosaic_0001>
module attributes {stable_mosaic.version = 11 : i64} {
  func.func @_crmsnorm_kernel(%arg0: i32, %arg1: i32, %arg2: memref<1x16x128xf32, #tpu.memory_space<vmem>>, %arg3: memref<1x1x128xf32, #tpu.memory_space<vmem>>, %arg4: memref<1x16x128xf32, #tpu.memory_space<vmem>>) attributes {dimension_semantics = [#tpu.dimension_semantics<parallel>, #tpu.dimension_semantics<parallel>], iteration_bounds = array<i64: 2, 1>, scalar_prefetch = 0 : i64, scratch_operands = 0 : i64, tpu.core_type = #tpu.core_type<tc>, window_params = [{transform_indices = @transform_0, window_bounds = array<i64: 1, 16, 128>}, {transform_indices = @transform_1, window_bounds = array<i64: 1, 1, 128>}, {transform_indices = @transform_2, window_bounds = array<i64: 1, 16, 128>}]} {
    %c0 = arith.constant 0 : index
    %c0_0 = arith.constant 0 : index
    %c0_1 = arith.constant 0 : index
    %0 = vector.load %arg2[%c0, %c0_0, %c0_1] : memref<1x16x128xf32, #tpu.memory_space<vmem>>, vector<1x16x128xf32>
    %1 = arith.mulf %0, %0 : vector<1x16x128xf32>
    %cst = arith.constant dense<0.000000e+00> : vector<1x16xf32>
    %2 = vector.multi_reduction <add>, %1, %cst [2] : vector<1x16x128xf32> to vector<1x16xf32>
    %3 = vector.shape_cast %2 : vector<1x16xf32> to vector<1x16x1xf32>
    %cst_2 = arith.constant 7.812500e-03 : f32
    %4 = vector.broadcast %cst_2 : f32 to vector<1x16x1xf32>
    %5 = arith.mulf %3, %4 : vector<1x16x1xf32>
    %cst_3 = arith.constant 9.99999993E-9 : f32
    %6 = vector.broadcast %cst_3 : f32 to vector<1x16x1xf32>
    %7 = arith.addf %5, %6 : vector<1x16x1xf32>
    %8 = math.rsqrt %7 : vector<1x16x1xf32>
    %c0_4 = arith.constant 0 : index
    %c0_5 = arith.constant 0 : index
    %c0_6 = arith.constant 0 : index
    %9 = vector.load %arg2[%c0_4, %c0_5, %c0_6] : memref<1x16x128xf32, #tpu.memory_space<vmem>>, vector<1x16x128xf32>
    %10 = vector.broadcast %8 : vector<1x16x1xf32> to vector<1x16x128xf32>
    %11 = arith.mulf %9, %10 : vector<1x16x128xf32>
    %c0_7 = arith.constant 0 : index
    %c0_8 = arith.constant 0 : index
    %c0_9 = arith.constant 0 : index
    %12 = vector.load %arg3[%c0_7, %c0_8, %c0_9] : memref<1x1x128xf32, #tpu.memory_space<vmem>>, vector<1x1x128xf32>
    %13 = vector.broadcast %12 : vector<1x1x128xf32> to vector<1x16x128xf32>
    %14 = arith.mulf %11, %13 : vector<1x16x128xf32>
    %c0_10 = arith.constant 0 : index
    %c0_11 = arith.constant 0 : index
    %c0_12 = arith.constant 0 : index
    %15 = vector.load %arg4[%c0_10, %c0_11, %c0_12] : memref<1x16x128xf32, #tpu.memory_space<vmem>>, vector<1x16x128xf32>
    tpu.vector_store %arg4[%c0_10, %c0_11, %c0_12], %14 {strides = array<i32>} : memref<1x16x128xf32, #tpu.memory_space<vmem>>, vector<1x16x128xf32>,
    return
  }
  func.func @transform_0(%arg0: i32, %arg1: i32) -> (i32, i32, i32) {
    %c0_i32 = arith.constant 0 : i32
    %c0_i32_0 = arith.constant 0 : i32
    return %arg0, %arg1, %c0_i32 : i32, i32, i32
  }
  func.func @transform_1(%arg0: i32, %arg1: i32) -> (i32, i32, i32) {
    %c0_i32 = arith.constant 0 : i32
    %c0_i32_0 = arith.constant 0 : i32
    %c0_i32_1 = arith.constant 0 : i32
    return %arg0, %c0_i32, %c0_i32_0 : i32, i32, i32
  }
  func.func @transform_2(%arg0: i32, %arg1: i32) -> (i32, i32, i32) {
    %c0_i32 = arith.constant 0 : i32
    %c0_i32_0 = arith.constant 0 : i32
    return %arg0, %arg1, %c0_i32 : i32, i32, i32
  }
}

</mosaic_0001>

<llo_original>
// kernel: tpu_custom_call.1
$region0: #{tpu_custom_call.1}
  #allocation0 [shape = 'u32[]', space=smem, size = 0x4, offset = 0x4, fixed_abs, tag = 'smem constant byte address 0x4 - core index']
  #allocation1 [shape = 'u32[144,128]{1,0:T(1,128)}', space=vmem, size = 0x12000, scoped, tag = 'internal scratch']
  %s0 = inlined_call_operand.hbm [shape: f32[2,16,128], index: 0, kind: input, shape index: {}]
  %s1 = inlined_call_operand.hbm [shape: f32[2,1,128], index: 1, kind: input, shape index: {}]
  %s2 = inlined_call_operand.hbm [shape: f32[2,16,128], index: 2, kind: output, shape index: {}]
  %s3 = sld [smem:[#allocation0]]
  $region49: #{tpu_custom_call.1} parent=0
    _
  %s5 = ssub.s32 1, %s3
  %s6 = scalar_select 0, %s5, %s3
  $region1: #{tpu_custom_call.1} parent=0
    #allocation2 [shape = 'u8[16384]{0}', space=vmem, size = 0x4000, scoped, tag = 'input window, operand 0']
    #allocation3 [shape = 's32[2]{0}', space=sflag, size = 0x8, scoped, tag = 'scoped memory for tpu_custom_call.1']
    #allocation4 [shape = 's32[2]{0}', space=sflag, size = 0x8, scoped, tag = 'scoped memory for tpu_custom_call.1']
    #allocation5 [shape = 'u8[1024]{0}', space=vmem, size = 0x400, scoped, tag = 'input window, operand 1']
    #allocation6 [shape = 's32[2]{0}', space=sflag, size = 0x8, scoped, tag = 'scoped memory for tpu_custom_call.1']
    #allocation7 [shape = 'u8[16384]{0}', space=vmem, size = 0x4000, scoped, tag = 'output window, operand 0']
    %7 = vsyncpa [#allocation3], 0
    %s8 = scalar_lea.sflag [#allocation3], 1
    %9 = vsyncpa %s8, 0
    %10 = vsyncpa [#allocation6], 0
    %s11 = scalar_lea.sflag [#allocation6], 1
    %12 = vsyncpa %s11, 0
    %13 = vsyncpa [#allocation4], 0
    %s14 = scalar_lea.sflag [#allocation4], 1
    %15 = vsyncpa %s14, 0
    loop: start=0, step=1, limit=4
    $region2: #{tpu_custom_call.1} parent=1 // loop_pre_header
      _
    $region3: #{tpu_custom_call.1} parent=1 // loop_header
      %s17 = sphi 0, %s21
      %p18 = scmp.ge.s32.totalorder %s17, 4
      %s24 = sphi 0, %s36
      %s25 = sphi 0, %s32
      %s26 = sphi 0, %s24
      %s27 = sphi 0, %s25
      %s28 = sphi 0, %s26
      %s29 = sphi 0, %s27
      %s41 = sphi 0, %s43
      %s44 = sphi 0, %s41
      %s45 = sphi 0, %s44
      %s61 = sphi 0, %s45
      %s67 = sphi 0, %s69
      %s70 = sphi 0, %s67
      %s71 = sphi 0, %s70
      %s87 = sphi 0, %s71
      %s95 = sphi 0, %s97
      %s98 = sphi 0, %s95
      %s99 = sphi 0, %s98
      %s115 = sphi 0, %s99
    $region4: #{tpu_custom_call.1} parent=1 // loop_header_branch
      %20 = sbr.rel (%p18) target = $region8
    $region5: #{tpu_custom_call.1} parent=1 // loop_body
      %s22 = ssub.s32 %s17, 1
      %s23 = ssub.s32 %s17, 2
      %s30 = sadd.s32 1, %s25
      %p31 = scmp.ge.s32.totalorder %s30, 1
      %s32 = scalar_select %p31, 0, %s30
      %s33 = sadd.s32 1, %s24
      %s34 = scalar_select %p31, %s33, %s24
      %p35 = scmp.ge.s32.totalorder %s34, 2
      %s36 = scalar_select %p35, 0, %s34
      %s37 = ssub.s32 %s24, %s36
      %s38 = ssub.s32 %s25, %s32
      %s39 = sor.u32 %s37, %s38
      %p40 = scmp.eq.s32.totalorder %s39, 0
      %s42 = sadd.s32 %s41, 1
      %s43 = scalar_select %p40, %s41, %s42
      %p46 = pneg %p40
      %p47 = scmp.eq.s32.totalorder %s17, 1
      %p48 = por %p46, %p47
      %p49 = scmp.ne.s32.totalorder %s41, %s44
      %p50 = scmp.eq.s32.totalorder %s17, 0
      %p51 = por %p49, %p50
      %p52 = scmp.ne.s32.totalorder %s41, %s44
      %p53 = scmp.eq.s32.totalorder %s22, 1
      %p54 = por %p52, %p53
      %p55 = scmp.ne.s32.totalorder %s44, %s45
      %p56 = scmp.eq.s32.totalorder %s22, 0
      %p57 = por %p55, %p56
      %p58 = scmp.ne.s32.totalorder %s44, %s45
      %p59 = scmp.eq.s32.totalorder %s23, 1
      %p60 = por %p58, %p59
      %p62 = scmp.ne.s32.totalorder %s45, %s61
      %p63 = scmp.eq.s32.totalorder %s23, 0
      %p64 = por %p62, %p63
      %s65 = ssub.s32 %s24, %s36
      %p66 = scmp.eq.s32.totalorder %s65, 0
      %s68 = sadd.s32 %s67, 1
      %s69 = scalar_select %p66, %s67, %s68
      %p72 = pneg %p66
      %p73 = scmp.eq.s32.totalorder %s17, 1
      %p74 = por %p72, %p73
      %p75 = scmp.ne.s32.totalorder %s67, %s70
      %p76 = scmp.eq.s32.totalorder %s17, 0
      %p77 = por %p75, %p76
      %p78 = scmp.ne.s32.totalorder %s67, %s70
      %p79 = scmp.eq.s32.totalorder %s22, 1
      %p80 = por %p78, %p79
      %p81 = scmp.ne.s32.totalorder %s70, %s71
      %p82 = scmp.eq.s32.totalorder %s22, 0
      %p83 = por %p81, %p82
      %p84 = scmp.ne.s32.totalorder %s70, %s71
      %p85 = scmp.eq.s32.totalorder %s23, 1
      %p86 = por %p84, %p85
      %p88 = scmp.ne.s32.totalorder %s71, %s87
      %p89 = scmp.eq.s32.totalorder %s23, 0
      %p90 = por %p88, %p89
      %s91 = ssub.s32 %s24, %s36
      %s92 = ssub.s32 %s25, %s32
      %s93 = sor.u32 %s91, %s92
      %p94 = scmp.eq.s32.totalorder %s93, 0
      %s96 = sadd.s32 %s95, 1
      %s97 = scalar_select %p94, %s95, %s96
      %p100 = pneg %p94
      %p101 = scmp.eq.s32.totalorder %s17, 1
      %p102 = por %p100, %p101
      %p103 = scmp.ne.s32.totalorder %s95, %s98
      %p104 = scmp.eq.s32.totalorder %s17, 0
      %p105 = por %p103, %p104
      %p106 = scmp.ne.s32.totalorder %s95, %s98
      %p107 = scmp.eq.s32.totalorder %s22, 1
      %p108 = por %p106, %p107
      %p109 = scmp.ne.s32.totalorder %s98, %s99
      %p110 = scmp.eq.s32.totalorder %s22, 0
      %p111 = por %p109, %p110
      %p112 = scmp.ne.s32.totalorder %s98, %s99
      %p113 = scmp.eq.s32.totalorder %s23, 1
      %p114 = por %p112, %p113
      %p116 = scmp.ne.s32.totalorder %s99, %s115
      %p117 = scmp.eq.s32.totalorder %s23, 0
      %p118 = por %p116, %p117
      %p119 = scmp.le.s32.totalorder 1, %s17
      %p120 = scmp.lt.s32.totalorder %s17, 3
      %p121 = pnand %p119, %p120
      %p122 = pneg %p121
      // Predicated region
      $region9: #{tpu_custom_call.1} parent=5 // pred_check
        _
      $region10: #{tpu_custom_call.1} parent=5 // pred_check_branch
        %124 = sbr.rel (%p121) target = $region12
      $region11: #{tpu_custom_call.1} parent=5 // pred_region
        %s125 = ssub.s32 %s17, 1
      $region12: #{tpu_custom_call.1} parent=5 // pred_fallthru
        _
      %p126 = scmp.lt.s32.totalorder %s17, 2
      // Predicated region
      $region13: #{tpu_custom_call.1} parent=5 // pred_check
        %p127 = pneg %p126
      $region14: #{tpu_custom_call.1} parent=5 // pred_check_branch
        %129 = sbr.rel (%p127) target = $region16
      $region15: #{tpu_custom_call.1} parent=5 // pred_region
        // Predicated region
        $region17: #{tpu_custom_call.1} parent=15 // pred_check
          %p130 = pneg %p51
        $region18: #{tpu_custom_call.1} parent=15 // pred_check_branch
          %132 = sbr.rel (%p130) target = $region20
        $region19: #{tpu_custom_call.1} parent=15 // pred_region
          %s133 = sand.u32 %s41, 1
          %s134 = scalar_lea.sflag [#allocation3], %s133
          %s135 = sand.u32 %s41, 1
          %s136 = smul.addr %s135, 16
          %s137 = scalar_lea.vmem [#allocation2], %s136
          %s138 = smul.u32 2, %s25
          %s140 = ssub.s32 256, 256
          %141 = vsyncadd %s134, %s140
          %s142 = smul.addr %s24, 2
          %s143 = sadd.s32 %s138, %s142
          %s144 = smul.addr %s143, 128
          %s145 = scalar_lea.hbm %s0, %s144
          %s146 = sshll.u32 %s137, 4
          %s147 = int_to_ptr.vmem [resolvable:$true] %s146
          %152 = dma.hbm_to_vmem [thread:$0]  %s145, 256, %s147, %s134, 128, 128, 8
        $region20: #{tpu_custom_call.1} parent=15 // pred_fallthru
          _
        // Predicated region
        $region21: #{tpu_custom_call.1} parent=15 // pred_check
          %p153 = pneg %p77
        $region22: #{tpu_custom_call.1} parent=15 // pred_check_branch
          %155 = sbr.rel (%p153) target = $region24
        $region23: #{tpu_custom_call.1} parent=15 // pred_region
          %s156 = sand.u32 %s67, 1
          %s157 = scalar_lea.sflag [#allocation6], %s156
          %s158 = sand.u32 %s67, 1
          %s159 = scalar_lea.vmem [#allocation5], %s158
          %s161 = ssub.s32 16, 16
          %162 = vsyncadd %s157, %s161
          %s163 = smul.addr %s24, 16
          %s164 = scalar_lea.hbm %s1, %s163
          %s166 = sshll.u32 %s159, 4
          %s167 = int_to_ptr.vmem [resolvable:$true] %s166
          %169 = dma.hbm_to_vmem [thread:$0]  %s164, 16, %s167, %s157
        $region24: #{tpu_custom_call.1} parent=15 // pred_fallthru
          _
      $region16: #{tpu_custom_call.1} parent=5 // pred_fallthru
        _
      %p170 = scmp.le.s32.totalorder 1, %s17
      %p171 = scmp.lt.s32.totalorder %s17, 3
      %p172 = pnand %p170, %p171
      %p173 = pneg %p172
      // Predicated region
      $region25: #{tpu_custom_call.1} parent=5 // pred_check
        _
      $region26: #{tpu_custom_call.1} parent=5 // pred_check_branch
        %175 = sbr.rel (%p172) target = $region28
      $region27: #{tpu_custom_call.1} parent=5 // pred_region
        %s176 = ssub.s32 %s17, 1
        %s177 = sand.u32 %s44, 1
        %s178 = scalar_lea.sflag [#allocation3], %s177
        %s179 = sand.u32 %s44, 1
        %s180 = smul.addr %s179, 16
        %s181 = scalar_lea.vmem [#allocation2], %s180
        // Predicated region
        $region29: #{tpu_custom_call.1} parent=27 // pred_check
          %p182 = pneg %p57
        $region30: #{tpu_custom_call.1} parent=27 // pred_check_branch
          %184 = sbr.rel (%p182) target = $region32
        $region31: #{tpu_custom_call.1} parent=27 // pred_region
          %185 = dma.done %s178, 256
        $region32: #{tpu_custom_call.1} parent=27 // pred_fallthru
          _
        %s186 = sand.u32 %s70, 1
        %s187 = scalar_lea.sflag [#allocation6], %s186
        %s188 = sand.u32 %s70, 1
        %s189 = scalar_lea.vmem [#allocation5], %s188
        // Predicated region
        $region33: #{tpu_custom_call.1} parent=27 // pred_check
          %p190 = pneg %p83
        $region34: #{tpu_custom_call.1} parent=27 // pred_check_branch
          %192 = sbr.rel (%p190) target = $region36
        $region35: #{tpu_custom_call.1} parent=27 // pred_region
          %193 = dma.done %s187, 16
        $region36: #{tpu_custom_call.1} parent=27 // pred_fallthru
          _
        %s194 = sand.u32 %s44, 1
        %s195 = scalar_lea.sflag [#allocation3], %s194
        %s196 = sand.u32 %s44, 1
        %s197 = smul.addr %s196, 16
        %s198 = scalar_lea.vmem [#allocation2], %s197
        %p199 = pneg %p57
        %p200 = pneg %p54
        %s201 = sand.u32 %s70, 1
        %s202 = scalar_lea.sflag [#allocation6], %s201
        %s203 = sand.u32 %s70, 1
        %s204 = scalar_lea.vmem [#allocation5], %s203
        %p205 = pneg %p83
        %p206 = pneg %p80
        %p207 = pneg %p111
        %p208 = pneg %p108
        %s209 = sand.u32 %s98, 1
        %s210 = scalar_lea.sflag [#allocation4], %s209
        %s211 = sand.u32 %s98, 1
        %s212 = smul.addr %s211, 16
        %s213 = scalar_lea.vmem [#allocation7], %s212
        %s214 = smul.u32 2, %s27
        %s215 = smul.u32 2, %s27
        %v216 = vld [vmem:[%s181] sm:$0xff]
        %v217 = vld [vmem:[%s181 + $0x8] sm:$0xff]
        %v218 = vmul.f32 %v216, %v216
        %v219 = vmul.f32 %v217, %v217
        %220 = vadd.xlane.f32.xlu0 %v218
        %v221 = vpop.xlane.xlu0 %220
        %222 = vadd.xlane.f32.xlu0 %v219
        %v223 = vpop.xlane.xlu0 %222
        %v224 = vmul.f32 %v221, 0.0078125
        %v225 = vmul.f32 %v223, 0.0078125
        %v226 = vadd.f32 %v224, 1e-08
        %v227 = vadd.f32 %v225, 1e-08
        %v228 = vrsqrt.pop %v226
        %v229 = vrsqrt.pop %v227
        %v230 = vmul.f32 %v216, %v228
        %v231 = vmul.f32 %v217, %v229
        %v232 = vld [vmem:[%s189] sm:$0x1]
        %v234 = vlaneseq
        %v235 = vshrl.u32 %v234, 7
        %v236 = vsub.s32 0, %v235
        %v237 = vrot.slane %v232, %v236
        %v239 = vmul.f32 %v230, %v237
        %v240 = vmul.f32 %v231, %v237
        %241 = vst [vmem:[%s213] sm:$0xff] %v239
        %242 = vst [vmem:[%s213 + $0x8] sm:$0xff] %v240
        %s243 = sand.u32 %s98, 1
        %s244 = scalar_lea.sflag [#allocation4], %s243
        %s245 = sand.u32 %s98, 1
        %s246 = smul.addr %s245, 16
        %s247 = scalar_lea.vmem [#allocation7], %s246
        // Predicated region
        $region37: #{tpu_custom_call.1} parent=27 // pred_check
          %p248 = pneg %p108
        $region38: #{tpu_custom_call.1} parent=27 // pred_check_branch
          %250 = sbr.rel (%p248) target = $region40
        $region39: #{tpu_custom_call.1} parent=27 // pred_region
          %s251 = smul.u32 2, %s27
          %s253 = ssub.s32 256, 256
          %254 = vsyncadd %s244, %s253
          %s255 = smul.addr %s26, 2
          %s256 = sadd.s32 %s251, %s255
          %s257 = smul.addr %s256, 128
          %s258 = scalar_lea.hbm %s2, %s257
          %s259 = sshll.u32 %s247, 4
          %s260 = int_to_ptr.vmem [resolvable:$true] %s259
          %265 = dma.vmem_to_hbm [thread:$0]  %s260, 256, %s258, %s244, 128, 128, 8
        $region40: #{tpu_custom_call.1} parent=27 // pred_fallthru
          _
      $region28: #{tpu_custom_call.1} parent=5 // pred_fallthru
        _
      %p266 = scmp.le.s32.totalorder 2, %s17
      // Predicated region
      $region41: #{tpu_custom_call.1} parent=5 // pred_check
        %p267 = pneg %p266
      $region42: #{tpu_custom_call.1} parent=5 // pred_check_branch
        %269 = sbr.rel (%p267) target = $region44
      $region43: #{tpu_custom_call.1} parent=5 // pred_region
        %s270 = ssub.s32 %s17, 2
        // Predicated region
        $region45: #{tpu_custom_call.1} parent=43 // pred_check
          %p271 = pneg %p114
        $region46: #{tpu_custom_call.1} parent=43 // pred_check_branch
          %273 = sbr.rel (%p271) target = $region48
        $region47: #{tpu_custom_call.1} parent=43 // pred_region
          %s274 = sand.u32 %s99, 1
          %s275 = scalar_lea.sflag [#allocation4], %s274
          %s276 = sand.u32 %s99, 1
          %s277 = smul.addr %s276, 16
          %s278 = scalar_lea.vmem [#allocation7], %s277
          %279 = dma.done %s275, 256
        $region48: #{tpu_custom_call.1} parent=43 // pred_fallthru
          _
      $region44: #{tpu_custom_call.1} parent=5 // pred_fallthru
        _
    $region6: #{tpu_custom_call.1} parent=1 // loop_footer
      %s21 = sadd.s32 1, %s17
    $region7: #{tpu_custom_call.1} parent=1 // loop_footer_branch
      %16 = sbr.rel target = $region3
    $region8: #{tpu_custom_call.1} parent=1 // loop_exit
      _
    %280 = vsyncpa [#allocation3], 1
    %s281 = scalar_lea.sflag [#allocation3], 1
    %282 = vsyncpa %s281, 1
    %283 = vsyncpa [#allocation6], 1
    %s284 = scalar_lea.sflag [#allocation6], 1
    %285 = vsyncpa %s284, 1
    %286 = vsyncpa [#allocation4], 1
    %s287 = scalar_lea.sflag [#allocation4], 1
    %288 = vsyncpa %s287, 1

</llo_original>
